<compile_context>
chip_gen: v6e
topology: v6e:2x2x1
jax: 0.10.0
libtpu: 0.0.40
codegen_flags: <defaults>
</compile_context>

<pallas_src>
import jax
import jax.numpy as jnp
from jax.experimental import pallas as pl
from jax.experimental.pallas import tpu as pltpu

BN_EPS = 1e-5
NORM_EPS = 1e-12


def _bnneck_kernel(x_ref, gamma_ref, beta_ref, mask_ref, w_ref,
                   feat_ref, logit_ref):
    # x_ref:     (n, c*p)   flattened input, channel-major (PyTorch view)
    # gamma_ref: (1, c*p)   BN scale
    # beta_ref:  (1, c*p)   BN shift
    # mask_ref:  (c*p, c*p) same-part 0/1 mask
    # w_ref:     (c*p, K*p) packed, L2-normalized classifier weights
    # feat_ref:  (n, c*p)   normalized feature output (== [n, c, p] flat)
    # logit_ref: (n, K*p)   logits output (== [n, K, p] flat)
    x = x_ref[...].astype(jnp.float32)
    gamma = gamma_ref[...].astype(jnp.float32)
    beta = beta_ref[...].astype(jnp.float32)

    # --- BatchNorm1d (training mode: batch stats, biased variance) ---
    mean = jnp.mean(x, axis=0, keepdims=True)                 # [1, c*p]
    diff = x - mean
    var = jnp.mean(diff * diff, axis=0, keepdims=True)        # [1, c*p]
    scale = gamma * jax.lax.rsqrt(var + BN_EPS)               # gamma folded in
    y = diff * scale + beta                                   # [n, c*p]

    # --- per-part L2 norm over c, broadcast back to every lane of the part
    #     via one MXU matmul with the same-part mask (stays lane-dense) ---
    norm2 = jnp.dot(y * y, mask_ref[...].astype(jnp.float32),
                    preferred_element_type=jnp.float32)       # [n, c*p]
    inv = pl.reciprocal(jnp.maximum(jnp.sqrt(norm2), NORM_EPS), approx=False)
    feat = y * inv                                            # [n, c*p]

    # --- all parts' logits in a single MXU call ---
    logits = jnp.dot(feat, w_ref[...].astype(jnp.float32),
                     preferred_element_type=jnp.float32)      # [n, K*p]

    feat_ref[...] = feat.astype(feat_ref.dtype)
    logit_ref[...] = logits.astype(logit_ref.dtype)


def separate_bnnecks(x, fc_bin, bn_gamma, bn_beta):
    """x: [n, c, p];  fc_bin: [p, c, K];  bn_gamma/bn_beta: [c * p].

    Returns (feature [n, c, p], logits [n, K, p]) matching the PyTorch module.
    """
    n, c, p = x.shape
    K = fc_bin.shape[-1]
    cp = c * p
    kp = K * p

    # Exact PyTorch flatten (x.view(n, -1)); no transpose of x anywhere.
    x2d = x.reshape(n, cp)
    gamma2d = bn_gamma.reshape(1, cp)
    beta2d = bn_beta.reshape(1, cp)

    # Same-part mask in channel-major flattening: feature index = ch*p + part.
    idx = jnp.arange(cp)
    mask = (idx[:, None] % p == idx[None, :] % p).astype(x.dtype)   # [cp, cp]

    # Normalize fc_bin over channels (F.normalize(fc_bin, dim=1)) and pack
    # into a block-structured [c*p, K*p] matrix so that
    #   logits2d[n, k*p + part] = sum_ch feat2d[n, ch*p + part] * w_n[part, ch, k]
    # i.e. the matmul output is already in [n, K, p] order.
    w_n = fc_bin / jnp.maximum(
        jnp.sqrt(jnp.sum(fc_bin * fc_bin, axis=1, keepdims=True)), NORM_EPS)
    eye = jnp.eye(p, dtype=w_n.dtype)
    w_packed = jnp.einsum("pck,pq->cpkq", w_n, eye).reshape(cp, kp)

    feat2d, logit2d = pl.pallas_call(
        _bnneck_kernel,
        out_shape=(
            jax.ShapeDtypeStruct((n, cp), x.dtype),
            jax.ShapeDtypeStruct((n, kp), x.dtype),
        ),
        grid_spec=pltpu.PrefetchScalarGridSpec(
            num_scalar_prefetch=0,
            grid=(1,),
            in_specs=[
                pl.BlockSpec((n, cp), lambda i: (0, 0)),
                pl.BlockSpec((1, cp), lambda i: (0, 0)),
                pl.BlockSpec((1, cp), lambda i: (0, 0)),
                pl.BlockSpec((cp, cp), lambda i: (0, 0)),
                pl.BlockSpec((cp, kp), lambda i: (0, 0)),
            ],
            out_specs=[
                pl.BlockSpec((n, cp), lambda i: (0, 0)),
                pl.BlockSpec((n, kp), lambda i: (0, 0)),
            ],
        ),
        compiler_params=pltpu.CompilerParams(
            dimension_semantics=("arbitrary",)),
    )(x2d, gamma2d, beta2d, mask, w_packed)

    # Pure reshapes (no data movement): outputs are already in PyTorch order.
    feature_out = feat2d.reshape(n, c, p)
    logits_out = logit2d.reshape(n, K, p)
    return feature_out, logits_out


def _reference(x, fc_bin, bn_gamma, bn_beta):
    """Pure-JAX reference mirroring the PyTorch forward."""
    n, c, p = x.shape
    xf = x.reshape(n, c * p)
    mean = jnp.mean(xf, axis=0, keepdims=True)
    var = jnp.mean((xf - mean) ** 2, axis=0, keepdims=True)
    xf = bn_gamma * (xf - mean) / jnp.sqrt(var + BN_EPS) + bn_beta
    xb = xf.reshape(n, c, p)
    feature = jnp.transpose(xb, (2, 0, 1))                    # [p, n, c]
    feature = feature / jnp.maximum(
        jnp.linalg.norm(feature, axis=-1, keepdims=True), NORM_EPS)
    w_n = fc_bin / jnp.maximum(
        jnp.linalg.norm(fc_bin, axis=1, keepdims=True), NORM_EPS)
    logits = jnp.einsum("pnc,pck->pnk", feature, w_n)
    return jnp.transpose(feature, (1, 2, 0)), jnp.transpose(logits, (1, 2, 0))


if __name__ == "__main__":
    # Small shapes consistent with the module: parts_num=4, in_channels=32,
    # class_num=64, batch n=8.
    n, c, p, K = 8, 32, 4, 64

    key = jax.random.PRNGKey(0)
    kx, kw = jax.random.split(key)
    x = jax.random.normal(kx, (n, c, p), dtype=jnp.float32)

    # fc_bin: xavier_uniform on [p, c, K]
    bound = (6.0 / (c * K + p * K)) ** 0.5
    fc_bin = jax.random.uniform(kw, (p, c, K), dtype=jnp.float32,
                                minval=-bound, maxval=bound)
    # BatchNorm1d affine params (PyTorch init: weight=1, bias=0)
    bn_gamma = jnp.ones((c * p,), dtype=jnp.float32)
    bn_beta = jnp.zeros((c * p,), dtype=jnp.float32)

    feature, logits = separate_bnnecks(x, fc_bin, bn_gamma, bn_beta)
    feature, logits = jax.block_until_ready((feature, logits))

    ref_feature, ref_logits = _reference(x, fc_bin, bn_gamma, bn_beta)
    assert feature.shape == (n, c, p) and logits.shape == (n, K, p)
    assert jnp.allclose(feature, ref_feature, atol=1e-3, rtol=1e-3)
    assert jnp.allclose(logits, ref_logits, atol=1e-3, rtol=1e-3)

    # TODO(synk): BatchNorm1d running_mean/var buffer updates are not modeled
    # (they do not affect the training-mode forward output).
    print("KERNEL_OK")
</pallas_src>

<mosaic_0001>
module attributes {stable_mosaic.version = 11 : i64} {
  func.func @_bnneck_kernel(%arg0: i32, %arg1: memref<8x128xf32, #tpu.memory_space<vmem>>, %arg2: memref<1x128xf32, #tpu.memory_space<vmem>>, %arg3: memref<1x128xf32, #tpu.memory_space<vmem>>, %arg4: memref<128x128xf32, #tpu.memory_space<vmem>>, %arg5: memref<128x256xf32, #tpu.memory_space<vmem>>, %arg6: memref<8x128xf32, #tpu.memory_space<vmem>>, %arg7: memref<8x256xf32, #tpu.memory_space<vmem>>) attributes {dimension_semantics = [#tpu.dimension_semantics<arbitrary>], iteration_bounds = array<i64: 1>, scalar_prefetch = 0 : i64, scratch_operands = 0 : i64, tpu.core_type = #tpu.core_type<tc>, window_params = [{pipeline_mode = #tpu.pipeline_mode<synchronous>, transform_indices = @transform_0, window_bounds = array<i64: 8, 128>}, {pipeline_mode = #tpu.pipeline_mode<synchronous>, transform_indices = @transform_1, window_bounds = array<i64: 1, 128>}, {pipeline_mode = #tpu.pipeline_mode<synchronous>, transform_indices = @transform_2, window_bounds = array<i64: 1, 128>}, {pipeline_mode = #tpu.pipeline_mode<synchronous>, transform_indices = @transform_3, window_bounds = array<i64: 128, 128>}, {pipeline_mode = #tpu.pipeline_mode<synchronous>, transform_indices = @transform_4, window_bounds = array<i64: 128, 256>}, {pipeline_mode = #tpu.pipeline_mode<synchronous>, transform_indices = @transform_5, window_bounds = array<i64: 8, 128>}, {pipeline_mode = #tpu.pipeline_mode<synchronous>, transform_indices = @transform_6, window_bounds = array<i64: 8, 256>}]} {
    %c0 = arith.constant 0 : index
    %c0_0 = arith.constant 0 : index
    %0 = vector.load %arg1[%c0, %c0_0] : memref<8x128xf32, #tpu.memory_space<vmem>>, vector<8x128xf32>
    %c0_1 = arith.constant 0 : index
    %c0_2 = arith.constant 0 : index
    %1 = vector.load %arg2[%c0_1, %c0_2] : memref<1x128xf32, #tpu.memory_space<vmem>>, vector<1x128xf32>
    %c0_3 = arith.constant 0 : index
    %c0_4 = arith.constant 0 : index
    %2 = vector.load %arg3[%c0_3, %c0_4] : memref<1x128xf32, #tpu.memory_space<vmem>>, vector<1x128xf32>
    %cst = arith.constant dense<0.000000e+00> : vector<128xf32>
    %3 = vector.multi_reduction <add>, %0, %cst [0] : vector<8x128xf32> to vector<128xf32>
    %4 = vector.shape_cast %3 : vector<128xf32> to vector<1x128xf32>
    %cst_5 = arith.constant 8.000000e+00 : f32
    %5 = vector.broadcast %cst_5 : f32 to vector<1x128xf32>
    %6 = arith.divf %4, %5 : vector<1x128xf32>
    %7 = vector.broadcast %6 : vector<1x128xf32> to vector<8x128xf32>
    %8 = arith.subf %0, %7 : vector<8x128xf32>
    %9 = arith.mulf %8, %8 : vector<8x128xf32>
    %cst_6 = arith.constant dense<0.000000e+00> : vector<128xf32>
    %10 = vector.multi_reduction <add>, %9, %cst_6 [0] : vector<8x128xf32> to vector<128xf32>
    %11 = vector.shape_cast %10 : vector<128xf32> to vector<1x128xf32>
    %cst_7 = arith.constant 8.000000e+00 : f32
    %12 = vector.broadcast %cst_7 : f32 to vector<1x128xf32>
    %13 = arith.divf %11, %12 : vector<1x128xf32>
    %cst_8 = arith.constant 9.99999974E-6 : f32
    %14 = vector.broadcast %cst_8 : f32 to vector<1x128xf32>
    %15 = arith.addf %13, %14 : vector<1x128xf32>
    %16 = math.rsqrt %15 : vector<1x128xf32>
    %17 = arith.mulf %1, %16 : vector<1x128xf32>
    %18 = vector.broadcast %17 : vector<1x128xf32> to vector<8x128xf32>
    %19 = arith.mulf %8, %18 : vector<8x128xf32>
    %20 = vector.broadcast %2 : vector<1x128xf32> to vector<8x128xf32>
    %21 = arith.addf %19, %20 : vector<8x128xf32>
    %22 = arith.mulf %21, %21 : vector<8x128xf32>
    %c0_9 = arith.constant 0 : index
    %c0_10 = arith.constant 0 : index
    %23 = vector.load %arg4[%c0_9, %c0_10] : memref<128x128xf32, #tpu.memory_space<vmem>>, vector<128x128xf32>
    %cst_11 = arith.constant dense<0.000000e+00> : vector<8x128xf32>
    %24 = tpu.matmul %22, %23, %cst_11 {dimension_numbers = #tpu.dot_dimension_numbers<[1], [0], [0], [1], [0, 0, 1, 1], [], []>} : vector<8x128xf32>, vector<128x128xf32>, vector<8x128xf32> -> vector<8x128xf32>
    %25 = math.sqrt %24 : vector<8x128xf32>
    %cst_12 = arith.constant 9.99999996E-13 : f32
    %26 = vector.broadcast %cst_12 : f32 to vector<8x128xf32>
    %27 = arith.maximumf %25, %26 : vector<8x128xf32>
    %28 = tpu.reciprocal %27 : vector<8x128xf32> -> vector<8x128xf32>
    %29 = arith.mulf %21, %28 : vector<8x128xf32>
    %c0_13 = arith.constant 0 : index
    %c0_14 = arith.constant 0 : index
    %30 = vector.load %arg5[%c0_13, %c0_14] : memref<128x256xf32, #tpu.memory_space<vmem>>, vector<128x256xf32>
    %cst_15 = arith.constant dense<0.000000e+00> : vector<8x256xf32>
    %31 = tpu.matmul %29, %30, %cst_15 {dimension_numbers = #tpu.dot_dimension_numbers<[1], [0], [0], [1], [0, 0, 1, 1], [], []>} : vector<8x128xf32>, vector<128x256xf32>, vector<8x256xf32> -> vector<8x256xf32>
    %c0_16 = arith.constant 0 : index
    %c0_17 = arith.constant 0 : index
    %32 = vector.load %arg6[%c0_16, %c0_17] : memref<8x128xf32, #tpu.memory_space<vmem>>, vector<8x128xf32>
    tpu.vector_store %arg6[%c0_16, %c0_17], %29 {strides = array<i32>} : memref<8x128xf32, #tpu.memory_space<vmem>>, vector<8x128xf32>,
    %c0_18 = arith.constant 0 : index
    %c0_19 = arith.constant 0 : index
    %33 = vector.load %arg7[%c0_18, %c0_19] : memref<8x256xf32, #tpu.memory_space<vmem>>, vector<8x256xf32>
    tpu.vector_store %arg7[%c0_18, %c0_19], %31 {strides = array<i32>} : memref<8x256xf32, #tpu.memory_space<vmem>>, vector<8x256xf32>,
    return
  }
  func.func @transform_0(%arg0: i32) -> (i32, i32) {
    %c0_i32 = arith.constant 0 : i32
    %c0_i32_0 = arith.constant 0 : i32
    %c0_i32_1 = arith.constant 0 : i32
    return %c0_i32, %c0_i32_0 : i32, i32
  }
  func.func @transform_1(%arg0: i32) -> (i32, i32) {
    %c0_i32 = arith.constant 0 : i32
    %c0_i32_0 = arith.constant 0 : i32
    %c0_i32_1 = arith.constant 0 : i32
    return %c0_i32, %c0_i32_0 : i32, i32
  }
  func.func @transform_2(%arg0: i32) -> (i32, i32) {
    %c0_i32 = arith.constant 0 : i32
    %c0_i32_0 = arith.constant 0 : i32
    %c0_i32_1 = arith.constant 0 : i32
    return %c0_i32, %c0_i32_0 : i32, i32
  }
  func.func @transform_3(%arg0: i32) -> (i32, i32) {
    %c0_i32 = arith.constant 0 : i32
    %c0_i32_0 = arith.constant 0 : i32
    %c0_i32_1 = arith.constant 0 : i32
    return %c0_i32, %c0_i32_0 : i32, i32
  }
  func.func @transform_4(%arg0: i32) -> (i32, i32) {
    %c0_i32 = arith.constant 0 : i32
    %c0_i32_0 = arith.constant 0 : i32
    %c0_i32_1 = arith.constant 0 : i32
    return %c0_i32, %c0_i32_0 : i32, i32
  }
  func.func @transform_5(%arg0: i32) -> (i32, i32) {
    %c0_i32 = arith.constant 0 : i32
    %c0_i32_0 = arith.constant 0 : i32
    %c0_i32_1 = arith.constant 0 : i32
    return %c0_i32, %c0_i32_0 : i32, i32
  }
  func.func @transform_6(%arg0: i32) -> (i32, i32) {
    %c0_i32 = arith.constant 0 : i32
    %c0_i32_0 = arith.constant 0 : i32
    %c0_i32_1 = arith.constant 0 : i32
    return %c0_i32, %c0_i32_0 : i32, i32
  }
}

</mosaic_0001>

<llo_original>
// kernel: tpu_custom_call.1
$region0: #{tpu_custom_call.1}
  #allocation0 [shape = 'u32[]', space=smem, size = 0x4, offset = 0x4, fixed_abs, tag = 'smem constant byte address 0x4 - core index']
  #allocation1 [shape = 'u32[144,128]{1,0:T(1,128)}', space=vmem, size = 0x12000, scoped, tag = 'internal scratch']
  %s0 = inlined_call_operand.hbm [shape: f32[8,128], index: 0, kind: input, shape index: {}]
  %s1 = inlined_call_operand.vmem [shape: f32[1,128], index: 1, kind: input, shape index: {}]
  %s2 = inlined_call_operand.vmem [shape: f32[1,128], index: 2, kind: input, shape index: {}]
  %s3 = inlined_call_operand.hbm [shape: f32[128,128], index: 3, kind: input, shape index: {}]
  %s4 = inlined_call_operand.hbm [shape: f32[128,256], index: 4, kind: input, shape index: {}]
  %s5 = inlined_call_operand.hbm [shape: f32[8,128], index: 5, kind: output, shape index: {0}]
  %s6 = inlined_call_operand.hbm [shape: f32[8,256], index: 6, kind: output, shape index: {1}]
  %7 = xla_tuple %s5, %s6
  %s8 = sld [smem:[#allocation0]]
  $region50: #{tpu_custom_call.1} parent=0
    _
  %s10 = ssub.s32 1, %s8
  %s11 = scalar_select 0, %s10, %s8
  $region1: #{tpu_custom_call.1} parent=0
    #allocation2 [shape = 'u8[4096]{0}', space=vmem, size = 0x1000, scoped, tag = 'input window, operand 0, single buffered']
    #allocation3 [shape = 's32[1]{0}', space=sflag, size = 0x4, scoped, tag = 'scoped memory for tpu_custom_call.1']
    #allocation4 [shape = 's32[1]{0}', space=sflag, size = 0x4, scoped, tag = 'scoped memory for tpu_custom_call.1']
    #allocation5 [shape = 'u8[65536]{0}', space=vmem, size = 0x10000, scoped, tag = 'input window, operand 3, single buffered']
    #allocation6 [shape = 's32[1]{0}', space=sflag, size = 0x4, scoped, tag = 'scoped memory for tpu_custom_call.1']
    #allocation7 [shape = 'u8[131072]{0}', space=vmem, size = 0x20000, scoped, tag = 'input window, operand 4, single buffered']
    #allocation8 [shape = 'u8[4096]{0}', space=vmem, size = 0x1000, scoped, tag = 'output window, operand 0, single buffered']
    #allocation9 [shape = 'u8[8192]{0}', space=vmem, size = 0x2000, scoped, tag = 'output window, operand 1, single buffered']
    #allocation10 [shape = 's32[1]{0}', space=sflag, size = 0x4, scoped, tag = 'scoped memory for tpu_custom_call.1']
    %12 = vsyncpa [#allocation3], 0
    %13 = vsyncpa [#allocation6], 0
    %14 = vsyncpa [#allocation4], 0
    %15 = vsyncpa [#allocation10], 0
    // Predicated region
    $region2: #{tpu_custom_call.1} parent=1 // pred_check
      _
    $region3: #{tpu_custom_call.1} parent=1 // pred_check_branch
      %17 = sbr.rel (0) target = $region5
    $region4: #{tpu_custom_call.1} parent=1 // pred_region
      %s19 = ssub.s32 128, 128
      %20 = vsyncadd [#allocation3], %s19
      %s22 = sshll.u32 [#allocation2], 4
      %s23 = int_to_ptr.vmem [resolvable:$true] %s22
      %25 = dma.hbm_to_vmem [thread:$0]  %s0, 128, %s23, [#allocation3]
    $region5: #{tpu_custom_call.1} parent=1 // pred_fallthru
      _
    // Predicated region
    $region6: #{tpu_custom_call.1} parent=1 // pred_check
      _
    $region7: #{tpu_custom_call.1} parent=1 // pred_check_branch
      %27 = sbr.rel (0) target = $region9
    $region8: #{tpu_custom_call.1} parent=1 // pred_region
      _
    $region9: #{tpu_custom_call.1} parent=1 // pred_fallthru
      _
    // Predicated region
    $region10: #{tpu_custom_call.1} parent=1 // pred_check
      _
    $region11: #{tpu_custom_call.1} parent=1 // pred_check_branch
      %29 = sbr.rel (0) target = $region13
    $region12: #{tpu_custom_call.1} parent=1 // pred_region
      _
    $region13: #{tpu_custom_call.1} parent=1 // pred_fallthru
      _
    // Predicated region
    $region14: #{tpu_custom_call.1} parent=1 // pred_check
      _
    $region15: #{tpu_custom_call.1} parent=1 // pred_check_branch
      %31 = sbr.rel (0) target = $region17
    $region16: #{tpu_custom_call.1} parent=1 // pred_region
      %s33 = ssub.s32 2048, 2048
      %34 = vsyncadd [#allocation6], %s33
      %s35 = sshll.u32 [#allocation5], 4
      %s36 = int_to_ptr.vmem [resolvable:$true] %s35
      %41 = dma.hbm_to_vmem [thread:$0]  %s3, 2048, %s36, [#allocation6], 128, 128, 8
    $region17: #{tpu_custom_call.1} parent=1 // pred_fallthru
      _
    // Predicated region
    $region18: #{tpu_custom_call.1} parent=1 // pred_check
      _
    $region19: #{tpu_custom_call.1} parent=1 // pred_check_branch
      %43 = sbr.rel (0) target = $region21
    $region20: #{tpu_custom_call.1} parent=1 // pred_region
      %s45 = ssub.s32 4096, 4096
      %46 = vsyncadd [#allocation6], %s45
      %s47 = sshll.u32 [#allocation7], 4
      %s48 = int_to_ptr.vmem [resolvable:$true] %s47
      %53 = dma.hbm_to_vmem [thread:$0]  %s4, 4096, %s48, [#allocation6], 256, 256, 16
    $region21: #{tpu_custom_call.1} parent=1 // pred_fallthru
      _
    // Predicated region
    $region22: #{tpu_custom_call.1} parent=1 // pred_check
      _
    $region23: #{tpu_custom_call.1} parent=1 // pred_check_branch
      %55 = sbr.rel (0) target = $region25
    $region24: #{tpu_custom_call.1} parent=1 // pred_region
      %56 = dma.done [#allocation3], 128
    $region25: #{tpu_custom_call.1} parent=1 // pred_fallthru
      _
    // Predicated region
    $region26: #{tpu_custom_call.1} parent=1 // pred_check
      _
    $region27: #{tpu_custom_call.1} parent=1 // pred_check_branch
      %58 = sbr.rel (0) target = $region29
    $region28: #{tpu_custom_call.1} parent=1 // pred_region
      %59 = dma.done [#allocation6], 2048
    $region29: #{tpu_custom_call.1} parent=1 // pred_fallthru
      _
    // Predicated region
    $region30: #{tpu_custom_call.1} parent=1 // pred_check
      _
    $region31: #{tpu_custom_call.1} parent=1 // pred_check_branch
      %61 = sbr.rel (0) target = $region33
    $region32: #{tpu_custom_call.1} parent=1 // pred_region
      %62 = dma.done [#allocation6], 4096
    $region33: #{tpu_custom_call.1} parent=1 // pred_fallthru
      _
    %v63 = vld [vmem:[#allocation2] sm:$0xff]
    %v64 = vld [vmem:[%s1] sm:$0x1]
    %v65 = vld [vmem:[%s2] sm:$0x1]
    %v66 = vrot.slane %v63, 4
    %v67 = vadd.f32 %v63, %v66
    %v68 = vrot.slane %v67, 2
    %v69 = vadd.f32 %v67, %v68
    %v70 = vrot.slane %v69, 1
    %v71 = vadd.f32 %v69, %v70
    %v72 = vrcp.pop 8.0
    %v73 = vmul.f32 %v71, %v72
    %v74 = vsub.f32 %v63, %v73
    %v75 = vmul.f32 %v74, %v74
    %v76 = vrot.slane %v75, 4
    %v77 = vadd.f32 %v75, %v76
    %v78 = vrot.slane %v77, 2
    %v79 = vadd.f32 %v77, %v78
    %v80 = vrot.slane %v79, 1
    %v81 = vadd.f32 %v79, %v80
    %v82 = vmul.f32 %v81, %v72
    %v83 = vadd.f32 %v82, 1e-05
    %v84 = vrsqrt.pop %v83
    %v85 = vmul.f32 %v64, %v84
    %v87 = vlaneseq
    %v88 = vshrl.u32 %v87, 7
    %v89 = vsub.s32 0, %v88
    %v90 = vrot.slane %v85, %v89
    %v92 = vmul.f32 %v74, %v90
    %v94 = vlaneseq
    %v95 = vshrl.u32 %v94, 7
    %v96 = vsub.s32 0, %v95
    %v97 = vrot.slane %v65, %v96
    %v99 = vadd.f32 %v92, %v97
    %v100 = vmul.f32 %v99, %v99
    %v101 = vld [vmem:[#allocation5] sm:$0xff]
    %v102 = vld [vmem:[#allocation5 + $0x8] sm:$0xff]
    %v103 = vld [vmem:[#allocation5 + $0x10] sm:$0xff]
    %v104 = vld [vmem:[#allocation5 + $0x18] sm:$0xff]
    %v105 = vld [vmem:[#allocation5 + $0x20] sm:$0xff]
    %v106 = vld [vmem:[#allocation5 + $0x28] sm:$0xff]
    %v107 = vld [vmem:[#allocation5 + $0x30] sm:$0xff]
    %v108 = vld [vmem:[#allocation5 + $0x38] sm:$0xff]
    %v109 = vld [vmem:[#allocation5 + $0x40] sm:$0xff]
    %v110 = vld [vmem:[#allocation5 + $0x48] sm:$0xff]
    %v111 = vld [vmem:[#allocation5 + $0x50] sm:$0xff]
    %v112 = vld [vmem:[#allocation5 + $0x58] sm:$0xff]
    %v113 = vld [vmem:[#allocation5 + $0x60] sm:$0xff]
    %v114 = vld [vmem:[#allocation5 + $0x68] sm:$0xff]
    %v115 = vld [vmem:[#allocation5 + $0x70] sm:$0xff]
    %v116 = vld [vmem:[#allocation5 + $0x78] sm:$0xff]
    %117 = vmatprep.subr.mxu0 0.0
    %118 = vmatpush1.msra.mxu0 %v116
    %119 = vmatprep.subr.mxu0 0.0
    %120 = vmatpush1.msra.mxu0 %v115
    %121 = vmatprep.subr.mxu0 0.0
    %122 = vmatpush1.msra.mxu0 %v114
    %123 = vmatprep.subr.mxu0 0.0
    %124 = vmatpush1.msra.mxu0 %v113
    %125 = vmatprep.subr.mxu0 0.0
    %126 = vmatpush1.msra.mxu0 %v112
    %127 = vmatprep.subr.mxu0 0.0
    %128 = vmatpush1.msra.mxu0 %v111
    %129 = vmatprep.subr.mxu0 0.0
    %130 = vmatpush1.msra.mxu0 %v110
    %131 = vmatprep.subr.mxu0 0.0
    %132 = vmatpush1.msra.mxu0 %v109
    %133 = vmatprep.subr.mxu0 0.0
    %134 = vmatpush1.msra.mxu0 %v108
    %135 = vmatprep.subr.mxu0 0.0
    %136 = vmatpush1.msra.mxu0 %v107
    %137 = vmatprep.subr.mxu0 0.0
    %138 = vmatpush1.msra.mxu0 %v106
    %139 = vmatprep.subr.mxu0 0.0
    %140 = vmatpush1.msra.mxu0 %v105
    %141 = vmatprep.subr.mxu0 0.0
    %142 = vmatpush1.msra.mxu0 %v104
    %143 = vmatprep.subr.mxu0 0.0
    %144 = vmatpush1.msra.mxu0 %v103
    %145 = vmatprep.subr.mxu0 0.0
    %146 = vmatpush1.msra.mxu0 %v102
    %147 = vmatprep.subr.mxu0 0.0
    %148 = vmatpush1.msra.mxu0 %v101
    %149 = vmatprep.subr.mxu0 0.0
    %150 = vmatpush2.msra.mxu0 0.0
    %151 = vmatprep.subr.mxu0 0.0
    %152 = vmatpush2.msra.mxu0 0.0
    %153 = vmatprep.subr.mxu0 0.0
    %154 = vmatpush2.msra.mxu0 0.0
    %155 = vmatprep.subr.mxu0 0.0
    %156 = vmatpush2.msra.mxu0 0.0
    %157 = vmatprep.subr.mxu0 0.0
    %158 = vmatpush2.msra.mxu0 0.0
    %159 = vmatprep.subr.mxu0 0.0
    %160 = vmatpush2.msra.mxu0 0.0
    %161 = vmatprep.subr.mxu0 0.0
    %162 = vmatpush2.msra.mxu0 0.0
    %163 = vmatprep.subr.mxu0 0.0
    %164 = vmatpush2.msra.mxu0 0.0
    %165 = vmatprep.subr.mxu0 0.0
    %166 = vmatpush2.msra.mxu0 0.0
    %167 = vmatprep.subr.mxu0 0.0
    %168 = vmatpush2.msra.mxu0 0.0
    %169 = vmatprep.subr.mxu0 0.0
    %170 = vmatpush2.msra.mxu0 0.0
    %171 = vmatprep.subr.mxu0 0.0
    %172 = vmatpush2.msra.mxu0 0.0
    %173 = vmatprep.subr.mxu0 0.0
    %174 = vmatpush2.msra.mxu0 0.0
    %175 = vmatprep.subr.mxu0 0.0
    %176 = vmatpush2.msra.mxu0 0.0
    %177 = vmatprep.subr.mxu0 0.0
    %178 = vmatpush2.msra.mxu0 0.0
    %179 = vmatprep.subr.mxu0 0.0
    %180 = vmatpush2.msra.mxu0 0.0
    %181 = vmatprep.mubr.f32.mxu0 0.0
    %182 = vmatmul.mubr.f32.gmra.mxu0 %v100
    %v183 = vpop.f32.mrf.mxu0
    %v184 = vadd.f32 0.0, %v183
    %v185 = vpop.f32.mrf.mxu0
    %186 = vdwg.mxu0
    %v187 = vrsqrt.pop %v184
    %v188 = vmul.f32 %v184, %v187
    %vm189 = vcmp.eq.f32.partialorder %v184, inf
    %v190 = vsel %vm189, %v184, %v188
    %vm191 = vcmp.eq.f32.partialorder %v184, 0.0
    %v192 = vand.u32 %v184, 2147483648
    %v193 = vsel %vm191, %v192, %v190
    %v194 = vmax.f32 %v193, 1e-12
    %v195 = vrcp.pop %v194
    %v196 = vmul.f32 %v99, %v195
    %v197 = vld [vmem:[#allocation7] sm:$0xff]
    %v198 = vld [vmem:[#allocation7 + $0x8] sm:$0xff]
    %v199 = vld [vmem:[#allocation7 + $0x10] sm:$0xff]
    %v200 = vld [vmem:[#allocation7 + $0x18] sm:$0xff]
    %v201 = vld [vmem:[#allocation7 + $0x20] sm:$0xff]
    %v202 = vld [vmem:[#allocation7 + $0x28] sm:$0xff]
    %v203 = vld [vmem:[#allocation7 + $0x30] sm:$0xff]
    %v204 = vld [vmem:[#allocation7 + $0x38] sm:$0xff]
    %v205 = vld [vmem:[#allocation7 + $0x40] sm:$0xff]
    %v206 = vld [vmem:[#allocation7 + $0x48] sm:$0xff]
    %v207 = vld [vmem:[#allocation7 + $0x50] sm:$0xff]
    %v208 = vld [vmem:[#allocation7 + $0x58] sm:$0xff]
    %v209 = vld [vmem:[#allocation7 + $0x60] sm:$0xff]
    %v210 = vld [vmem:[#allocation7 + $0x68] sm:$0xff]
    %v211 = vld [vmem:[#allocation7 + $0x70] sm:$0xff]
    %v212 = vld [vmem:[#allocation7 + $0x78] sm:$0xff]
    %v213 = vld [vmem:[#allocation7 + $0x80] sm:$0xff]
    %v214 = vld [vmem:[#allocation7 + $0x88] sm:$0xff]
    %v215 = vld [vmem:[#allocation7 + $0x90] sm:$0xff]
    %v216 = vld [vmem:[#allocation7 + $0x98] sm:$0xff]
    %v217 = vld [vmem:[#allocation7 + $0xa0] sm:$0xff]
    %v218 = vld [vmem:[#allocation7 + $0xa8] sm:$0xff]
    %v219 = vld [vmem:[#allocation7 + $0xb0] sm:$0xff]
    %v220 = vld [vmem:[#allocation7 + $0xb8] sm:$0xff]
    %v221 = vld [vmem:[#allocation7 + $0xc0] sm:$0xff]
    %v222 = vld [vmem:[#allocation7 + $0xc8] sm:$0xff]
    %v223 = vld [vmem:[#allocation7 + $0xd0] sm:$0xff]
    %v224 = vld [vmem:[#allocation7 + $0xd8] sm:$0xff]
    %v225 = vld [vmem:[#allocation7 + $0xe0] sm:$0xff]
    %v226 = vld [vmem:[#allocation7 + $0xe8] sm:$0xff]
    %v227 = vld [vmem:[#allocation7 + $0xf0] sm:$0xff]
    %v228 = vld [vmem:[#allocation7 + $0xf8] sm:$0xff]
    %229 = vmatprep.subr.mxu0 %v228
    %230 = vmatpush1.msra.mxu0 %v227
    %231 = vmatprep.subr.mxu0 %v226
    %232 = vmatpush1.msra.mxu0 %v225
    %233 = vmatprep.subr.mxu0 %v224
    %234 = vmatpush1.msra.mxu0 %v223
    %235 = vmatprep.subr.mxu0 %v222
    %236 = vmatpush1.msra.mxu0 %v221
    %237 = vmatprep.subr.mxu0 %v220
    %238 = vmatpush1.msra.mxu0 %v219
    %239 = vmatprep.subr.mxu0 %v218
    %240 = vmatpush1.msra.mxu0 %v217
    %241 = vmatprep.subr.mxu0 %v216
    %242 = vmatpush1.msra.mxu0 %v215
    %243 = vmatprep.subr.mxu0 %v214
    %244 = vmatpush1.msra.mxu0 %v213
    %245 = vmatprep.subr.mxu0 %v212
    %246 = vmatpush1.msra.mxu0 %v211
    %247 = vmatprep.subr.mxu0 %v210
    %248 = vmatpush1.msra.mxu0 %v209
    %249 = vmatprep.subr.mxu0 %v208
    %250 = vmatpush1.msra.mxu0 %v207
    %251 = vmatprep.subr.mxu0 %v206
    %252 = vmatpush1.msra.mxu0 %v205
    %253 = vmatprep.subr.mxu0 %v204
    %254 = vmatpush1.msra.mxu0 %v203
    %255 = vmatprep.subr.mxu0 %v202
    %256 = vmatpush1.msra.mxu0 %v201
    %257 = vmatprep.subr.mxu0 %v200
    %258 = vmatpush1.msra.mxu0 %v199
    %259 = vmatprep.subr.mxu0 %v198
    %260 = vmatpush1.msra.mxu0 %v197
    %261 = vmatprep.subr.mxu0 0.0
    %262 = vmatpush2.msra.mxu0 0.0
    %263 = vmatprep.subr.mxu0 0.0
    %264 = vmatpush2.msra.mxu0 0.0
    %265 = vmatprep.subr.mxu0 0.0
    %266 = vmatpush2.msra.mxu0 0.0
    %267 = vmatprep.subr.mxu0 0.0
    %268 = vmatpush2.msra.mxu0 0.0
    %269 = vmatprep.subr.mxu0 0.0
    %270 = vmatpush2.msra.mxu0 0.0
    %271 = vmatprep.subr.mxu0 0.0
    %272 = vmatpush2.msra.mxu0 0.0
    %273 = vmatprep.subr.mxu0 0.0
    %274 = vmatpush2.msra.mxu0 0.0
    %275 = vmatprep.subr.mxu0 0.0
    %276 = vmatpush2.msra.mxu0 0.0
    %277 = vmatprep.subr.mxu0 0.0
    %278 = vmatpush2.msra.mxu0 0.0
    %279 = vmatprep.subr.mxu0 0.0
    %280 = vmatpush2.msra.mxu0 0.0
    %281 = vmatprep.subr.mxu0 0.0
    %282 = vmatpush2.msra.mxu0 0.0
    %283 = vmatprep.subr.mxu0 0.0
    %284 = vmatpush2.msra.mxu0 0.0
    %285 = vmatprep.subr.mxu0 0.0
    %286 = vmatpush2.msra.mxu0 0.0
    %287 = vmatprep.subr.mxu0 0.0
    %288 = vmatpush2.msra.mxu0 0.0
    %289 = vmatprep.subr.mxu0 0.0
    %290 = vmatpush2.msra.mxu0 0.0
    %291 = vmatprep.subr.mxu0 0.0
    %292 = vmatpush2.msra.mxu0 0.0
    %293 = vmatprep.mubr.f32.mxu0 0.0
    %294 = vmatmul.mubr.f32.gmra.mxu0 %v196
    %v295 = vpop.f32.mrf.mxu0
    %v296 = vadd.f32 0.0, %v295
    %v297 = vpop.f32.mrf.mxu0
    %v298 = vadd.f32 0.0, %v297
    %299 = vdwg.mxu0
    %300 = vst [vmem:[#allocation8] sm:$0xff] %v196
    %301 = vst [vmem:[#allocation9] sm:$0xff] %v296
    %302 = vst [vmem:[#allocation9 + $0x8] sm:$0xff] %v298
    // Predicated region
    $region34: #{tpu_custom_call.1} parent=1 // pred_check
      _
    $region35: #{tpu_custom_call.1} parent=1 // pred_check_branch
      %304 = sbr.rel (0) target = $region37
    $region36: #{tpu_custom_call.1} parent=1 // pred_region
      %s306 = ssub.s32 128, 128
      %307 = vsyncadd [#allocation4], %s306
      %s309 = sshll.u32 [#allocation8], 4
      %s310 = int_to_ptr.vmem [resolvable:$true] %s309
      %312 = dma.vmem_to_hbm [thread:$0]  %s310, 128, %s5, [#allocation4]
    $region37: #{tpu_custom_call.1} parent=1 // pred_fallthru
      _
    // Predicated region
    $region38: #{tpu_custom_call.1} parent=1 // pred_check
      _
    $region39: #{tpu_custom_call.1} parent=1 // pred_check_branch
      %314 = sbr.rel (0) target = $region41
    $region40: #{tpu_custom_call.1} parent=1 // pred_region
      %s316 = ssub.s32 256, 256
      %317 = vsyncadd [#allocation10], %s316
      %s319 = sshll.u32 [#allocation9], 4
      %s320 = int_to_ptr.vmem [resolvable:$true] %s319
      %322 = dma.vmem_to_hbm [thread:$0]  %s320, 256, %s6, [#allocation10]
    $region41: #{tpu_custom_call.1} parent=1 // pred_fallthru
      _
    // Predicated region
    $region42: #{tpu_custom_call.1} parent=1 // pred_check
      _
    $region43: #{tpu_custom_call.1} parent=1 // pred_check_branch
      %324 = sbr.rel (0) target = $region45
    $region44: #{tpu_custom_call.1} parent=1 // pred_region
      %325 = dma.done [#allocation4], 128
    $region45: #{tpu_custom_call.1} parent=1 // pred_fallthru
      _
    // Predicated region
    $region46: #{tpu_custom_call.1} parent=1 // pred_check
      _
    $region47: #{tpu_custom_call.1} parent=1 // pred_check_branch
      %327 = sbr.rel (0) target = $region49
    $region48: #{tpu_custom_call.1} parent=1 // pred_region
      %328 = dma.done [#allocation10], 256
    $region49: #{tpu_custom_call.1} parent=1 // pred_fallthru
      _
    %329 = vsyncpa [#allocation3], 1
    %330 = vsyncpa [#allocation6], 1
    %331 = vsyncpa [#allocation4], 1
    %332 = vsyncpa [#allocation10], 1

</llo_original>
